<compile_context>
chip_gen: v7x
topology: tpu7x:2x2x1
jax: 0.10.0
libtpu: 0.0.40
codegen_flags: <defaults>
</compile_context>

<pallas_src>
import jax
import jax.numpy as jnp
from jax.experimental import pallas as pl
from jax.experimental.pallas import tpu as pltpu


_NEG_BIG = -1e30  # effectively -inf for padded class columns (exp underflows to 0)


def _round_up(x, m):
    return (x + m - 1) // m * m


def _vmem_limit_bytes():
    # Explicit scoped-VMEM limit: ~3/4 of physical capacity, capped at 100 MiB
    # (~48 MiB on v7x's 64 MiB VMEM, ~96 MiB on v5e/v6e's 128 MiB).
    try:
        cap = pltpu.get_tpu_info().vmem_capacity_bytes
        return int(min(100 * 1024 * 1024, (cap * 3) // 4))
    except Exception:
        return 48 * 1024 * 1024


def _resident_spec(block_shape, index_map):
    # Constant-index operand: one VMEM buffer is enough; double-buffering it
    # would double the resident weight footprint for nothing.
    buffered = getattr(pl, "Buffered", None)
    if buffered is not None:
        try:
            return pl.BlockSpec(block_shape, index_map, pipeline_mode=buffered(1))
        except TypeError:          # older jax without pipeline_mode kwarg
            pass
    return pl.BlockSpec(block_shape, index_map)


def _round_block_b(bb, B):
    bb = int(min(bb, 1024, _round_up(B, 16)))
    # Megacore (v7x: 2 TensorCores/chip): keep >= 2 batch grid steps whenever
    # the batch is big enough to split; harmless on v5e/v6e (1 TC).
    if B >= 64:
        bb = min(bb, _round_up((B + 1) // 2, 16))
    # MXU-friendly M multiples (256 covers v6e/v7x's 2x256x256 and is also a
    # multiple of v5e's 128); fall back to the bf16 sublane multiple (16).
    if bb >= 512:
        bb = (bb // 256) * 256
    elif bb >= 256:
        bb = 256
    elif bb >= 128:
        bb = 128
    else:
        bb = max(16, (bb // 16) * 16)
    return bb


# ----------------------------------------------------------------------------
# Kernels
# ----------------------------------------------------------------------------
def _fused_kernel(x_ref, w_ref, b_ref, o_ref):
    # MXU matmul (bf16 in, f32 accumulate), bias add + numerically stable
    # log-softmax in f32.  Only `logits` plus one short-lived temp are live at
    # a time: lse = m + log(sum(exp(logits - m))), then logits - lse.
    logits = jnp.dot(x_ref[...], w_ref[...], preferred_element_type=jnp.float32)
    logits = logits + b_ref[...]
    m = jnp.max(logits, axis=-1, keepdims=True)
    lse = m + jnp.log(jnp.sum(jnp.exp(logits - m), axis=-1, keepdims=True))
    o_ref[...] = (logits - lse).astype(o_ref.dtype)


def _class_tiled_kernel(x_ref, w_ref, b_ref, o_ref, acc_ref, m_ref, l_ref):
    # Grid = (batch blocks [parallel], class blocks [arbitrary, last]).
    # Online logsumexp across class tiles; raw f32 logits staged in acc_ref
    # (indexed by the class step on its leading axis -> documented-safe dynamic
    # indexing) and the whole lane-dense output row block is written once at
    # the last class step.
    k = pl.program_id(1)
    nk = pl.num_programs(1)

    @pl.when(k == 0)
    def _init():
        m_ref[...] = jnp.full(m_ref.shape, -jnp.inf, m_ref.dtype)
        l_ref[...] = jnp.zeros(l_ref.shape, l_ref.dtype)

    logits = jnp.dot(x_ref[...], w_ref[...], preferred_element_type=jnp.float32)
    logits = logits + b_ref[...]

    m_prev = m_ref[...]
    m_new = jnp.maximum(m_prev, jnp.max(logits, axis=-1, keepdims=True))
    l_ref[...] = (l_ref[...] * jnp.exp(m_prev - m_new)
                  + jnp.sum(jnp.exp(logits - m_new), axis=-1, keepdims=True))
    m_ref[...] = m_new

    acc_ref[k] = logits                       # (block_b, block_c) f32 staging

    @pl.when(k == nk - 1)
    def _finalize():
        lse = m_ref[...] + jnp.log(l_ref[...])          # (block_b, 1) f32
        kc = acc_ref.shape[0]
        bc = acc_ref.shape[2]
        for kk in range(kc):                             # static unroll
            o_ref[:, kk * bc:(kk + 1) * bc] = (acc_ref[kk] - lse).astype(o_ref.dtype)


# ----------------------------------------------------------------------------
# Wrappers
# ----------------------------------------------------------------------------
def make_linear_logsoftmax(weight, bias, *, block_b=None, block_c=None,
                           class_tiled=None, out_dtype=jnp.float32, unpad=True):
    """Preprocess weights once; return f(x) = log_softmax(x @ weight.T + bias).

    weight: (C, D) float32 (PyTorch nn.Linear layout), bias: (C,) float32.
    The transpose/pad/bf16-cast of the weight runs once here, not per call.
    unpad=False returns the padded (B_pad, C_pad) result (skips the extra HBM
    pass of the class-dim slice); the consumer must then ignore padded columns.
    """
    C, D = weight.shape
    vmem_limit = _vmem_limit_bytes()
    out_bytes = jnp.dtype(out_dtype).itemsize

    # Pad the contraction dim to a lane multiple: aligned loads, full MXU K
    # passes; zero padding is numerically free.
    D_pad = _round_up(D, 128)

    # ---- choose path (weight-resident vs class-tiled) -----------------------
    C_pad128 = _round_up(C, 128)
    resident_bytes = D_pad * C_pad128 * 2 + C_pad128 * 4        # single-buffered w + b
    per_row_single = (2 * D_pad * 2                              # dbl-buffered bf16 x row
                      + 2 * C_pad128 * out_bytes                 # dbl-buffered out row
                      + 2 * C_pad128 * 4)                        # live f32 temporaries
    budget_single = vmem_limit - resident_bytes - (4 << 20)
    bb_mem_single = budget_single // per_row_single if budget_single > 0 else 0

    use_class_tiling = class_tiled
    if use_class_tiling is None:
        use_class_tiling = (resident_bytes > (vmem_limit * 6) // 10) or bb_mem_single < 16

    if not use_class_tiling:
        C_pad = C_pad128
        bc = None
    else:
        if block_c is None:
            bc = min(2048, _round_up(min(C, 2048), 128))
            # keep the double-buffered bf16 weight tile within ~1/4 of VMEM
            while bc > 128 and 4 * D_pad * bc > vmem_limit // 4:
                bc //= 2
            bc = max(128, (bc // 128) * 128)
        else:
            bc = max(128, _round_up(int(block_c), 128))
        C_pad = _round_up(C, bc)

    # ---- weight preprocessing (hoisted: runs once per weight value) ---------
    w_t = weight.T.astype(jnp.bfloat16)                          # (D, C)
    if D_pad != D or C_pad != C:
        w_t = jnp.pad(w_t, ((0, D_pad - D), (0, C_pad - C)))
    b_p = bias.astype(jnp.float32)
    if C_pad != C:
        b_p = jnp.pad(b_p, (0, C_pad - C), constant_values=_NEG_BIG)
    b_p = b_p.reshape(1, C_pad)

    def apply(x):
        B, Dx = x.shape
        assert Dx == D, "x must be (batch, input_dim)"

        if block_b is not None:
            bb = max(16, _round_up(int(block_b), 16))
            bb = min(bb, _round_up(B, 16))
        elif not use_class_tiling:
            bb = _round_block_b(max(bb_mem_single, 16), B)
        else:
            per_row = (C_pad * 4                     # f32 logits staging scratch
                       + 2 * C_pad * out_bytes       # dbl-buffered out row block
                       + 2 * D_pad * 2               # dbl-buffered bf16 x row
                       + 2 * bc * 4)                 # live f32 temporaries
            budget = vmem_limit - 4 * D_pad * bc - (4 << 20)
            bb = _round_block_b(max(budget // per_row, 16), B)

        B_pad = _round_up(B, bb)
        x_p = x
        if B_pad != B or D_pad != D:
            x_p = jnp.pad(x, ((0, B_pad - B), (0, D_pad - D)))   # zero rows/cols: harmless
        x_p = x_p.astype(jnp.bfloat16)

        if not use_class_tiling:
            grid = (B_pad // bb,)
            out = pl.pallas_call(
                _fused_kernel,
                out_shape=jax.ShapeDtypeStruct((B_pad, C_pad), out_dtype),
                grid_spec=pltpu.PrefetchScalarGridSpec(
                    num_scalar_prefetch=0,
                    grid=grid,
                    in_specs=[
                        pl.BlockSpec((bb, D_pad), lambda i: (i, 0)),      # streamed x tile
                        _resident_spec((D_pad, C_pad), lambda i: (0, 0)), # resident weight
                        _resident_spec((1, C_pad), lambda i: (0, 0)),     # resident bias
                    ],
                    out_specs=pl.BlockSpec((bb, C_pad), lambda i: (i, 0)),
                ),
                compiler_params=pltpu.CompilerParams(
                    dimension_semantics=("parallel",),
                    vmem_limit_bytes=vmem_limit,
                ),
            )(x_p, w_t, b_p)
        else:
            kc = C_pad // bc
            grid = (B_pad // bb, kc)
            out = pl.pallas_call(
                _class_tiled_kernel,
                out_shape=jax.ShapeDtypeStruct((B_pad, C_pad), out_dtype),
                grid_spec=pltpu.PrefetchScalarGridSpec(
                    num_scalar_prefetch=0,
                    grid=grid,
                    in_specs=[
                        pl.BlockSpec((bb, D_pad), lambda i, k: (i, 0)),   # x: resident over k
                        pl.BlockSpec((D_pad, bc), lambda i, k: (0, k)),   # streamed weight tile
                        pl.BlockSpec((1, bc), lambda i, k: (0, k)),       # streamed bias tile
                    ],
                    out_specs=pl.BlockSpec((bb, C_pad), lambda i, k: (i, 0)),  # resident over k
                    scratch_shapes=[
                        pltpu.VMEM((kc, bb, bc), jnp.float32),   # staged f32 logits
                        pltpu.VMEM((bb, 1), jnp.float32),        # running max
                        pltpu.VMEM((bb, 1), jnp.float32),        # running sum
                    ],
                ),
                compiler_params=pltpu.CompilerParams(
                    dimension_semantics=("parallel", "arbitrary"),
                    vmem_limit_bytes=vmem_limit,
                ),
            )(x_p, w_t, b_p)

        # TODO(synk): for write-bound shapes (small/medium D), pass
        # out_dtype=jnp.bfloat16 and/or fuse the downstream NLL gather into the
        # kernel to halve the dominant f32 output HBM stream.
        if unpad and (B_pad != B or C_pad != C):
            # NOTE: the class-dim slice re-materializes the output; pass
            # unpad=False and mask in the consumer when that matters.
            out = out[:B, :C]
        return out

    return apply


def linear_logsoftmax(x, weight, bias, **kwargs):
    """One-shot forward of LINEAR_LOGSOFTMAX: log_softmax(x @ weight.T + bias, dim=1)."""
    return make_linear_logsoftmax(weight, bias, **kwargs)(x)


if __name__ == "__main__":
    key = jax.random.PRNGKey(0)

    def make_params(k, B, D, C):
        kx, kw, kb = jax.random.split(k, 3)
        bound = 1.0 / (D ** 0.5)   # PyTorch nn.Linear-style uniform bound
        x = jax.random.normal(kx, (B, D), dtype=jnp.float32)
        w = jax.random.uniform(kw, (C, D), minval=-bound, maxval=bound, dtype=jnp.float32)
        b = jax.random.uniform(kb, (C,), minval=-bound, maxval=bound, dtype=jnp.float32)
        return x, w, b

    # Case 1: small shapes matching LINEAR_LOGSOFTMAX(input_dim=32, nclass=16).
    x1, w1, b1 = make_params(key, 8, 32, 16)
    out1 = jax.block_until_ready(linear_logsoftmax(x1, w1, b1))
    ref1 = jax.nn.log_softmax(x1 @ w1.T + b1, axis=1)
    assert out1.shape == ref1.shape
    assert jnp.allclose(out1, ref1, atol=3e-2, rtol=3e-2), "mismatch (case 1)"

    # Case 2: resident-weight path, hoisted weight prep, multi-step batch grid,
    # batch padding (90 -> 96) and class padding to 128 lanes (200 -> 256).
    x2, w2, b2 = make_params(jax.random.fold_in(key, 1), 90, 64, 200)
    apply2 = make_linear_logsoftmax(w2, b2, block_b=32)   # prep runs once here
    out2 = jax.block_until_ready(apply2(x2))
    ref2 = jax.nn.log_softmax(x2 @ w2.T + b2, axis=1)
    assert out2.shape == ref2.shape
    assert jnp.allclose(out2, ref2, atol=3e-2, rtol=3e-2), "mismatch (case 2)"

    # Case 3: force the class-tiled online-logsumexp path (what large-vocab /
    # v7x shapes take): grid=(1, 3) over 128-wide class tiles, D padded 160->256.
    x3, w3, b3 = make_params(jax.random.fold_in(key, 2), 48, 160, 300)
    out3 = jax.block_until_ready(
        linear_logsoftmax(x3, w3, b3, class_tiled=True, block_c=128))
    ref3 = jax.nn.log_softmax(x3 @ w3.T + b3, axis=1)
    assert out3.shape == ref3.shape
    assert jnp.allclose(out3, ref3, atol=3e-2, rtol=3e-2), "mismatch (case 3)"

    print("KERNEL_OK")
</pallas_src>

<mosaic_0001>
module attributes {stable_mosaic.version = 11 : i64} {
  func.func @_fused_kernel(%arg0: i32, %arg1: memref<16x128xbf16, #tpu.memory_space<vmem>>, %arg2: memref<128x128xbf16, #tpu.memory_space<vmem>>, %arg3: memref<1x128xf32, #tpu.memory_space<vmem>>, %arg4: memref<16x128xf32, #tpu.memory_space<vmem>>) attributes {dimension_semantics = [#tpu.dimension_semantics<parallel>], iteration_bounds = array<i64: 1>, scalar_prefetch = 0 : i64, scratch_operands = 0 : i64, tpu.core_type = #tpu.core_type<tc>, window_params = [{transform_indices = @transform_0, window_bounds = array<i64: 16, 128>}, {pipeline_mode = #tpu.pipeline_mode<synchronous>, transform_indices = @transform_1, window_bounds = array<i64: 128, 128>}, {pipeline_mode = #tpu.pipeline_mode<synchronous>, transform_indices = @transform_2, window_bounds = array<i64: 1, 128>}, {transform_indices = @transform_3, window_bounds = array<i64: 16, 128>}]} {
    %c0 = arith.constant 0 : index
    %c0_0 = arith.constant 0 : index
    %0 = vector.load %arg1[%c0, %c0_0] : memref<16x128xbf16, #tpu.memory_space<vmem>>, vector<16x128xbf16>
    %c0_1 = arith.constant 0 : index
    %c0_2 = arith.constant 0 : index
    %1 = vector.load %arg2[%c0_1, %c0_2] : memref<128x128xbf16, #tpu.memory_space<vmem>>, vector<128x128xbf16>
    %cst = arith.constant dense<0.000000e+00> : vector<16x128xf32>
    %2 = tpu.matmul %0, %1, %cst {dimension_numbers = #tpu.dot_dimension_numbers<[1], [0], [0], [1], [0, 0, 1, 1], [], []>} : vector<16x128xbf16>, vector<128x128xbf16>, vector<16x128xf32> -> vector<16x128xf32>
    %c0_3 = arith.constant 0 : index
    %c0_4 = arith.constant 0 : index
    %3 = vector.load %arg3[%c0_3, %c0_4] : memref<1x128xf32, #tpu.memory_space<vmem>>, vector<1x128xf32>
    %4 = vector.broadcast %3 : vector<1x128xf32> to vector<16x128xf32>
    %5 = arith.addf %2, %4 : vector<16x128xf32>
    %cst_5 = arith.constant dense<0xFF800000> : vector<16xf32>
    %6 = vector.multi_reduction <maximumf>, %5, %cst_5 [1] : vector<16x128xf32> to vector<16xf32>
    %7 = vector.shape_cast %6 : vector<16xf32> to vector<16x1xf32>
    %8 = vector.broadcast %7 : vector<16x1xf32> to vector<16x128xf32>
    %9 = arith.subf %5, %8 : vector<16x128xf32>
    %10 = math.exp %9 : vector<16x128xf32>
    %cst_6 = arith.constant dense<0.000000e+00> : vector<16xf32>
    %11 = vector.multi_reduction <add>, %10, %cst_6 [1] : vector<16x128xf32> to vector<16xf32>
    %12 = vector.shape_cast %11 : vector<16xf32> to vector<16x1xf32>
    %13 = math.log %12 : vector<16x1xf32>
    %14 = arith.addf %7, %13 : vector<16x1xf32>
    %15 = vector.broadcast %14 : vector<16x1xf32> to vector<16x128xf32>
    %16 = arith.subf %5, %15 : vector<16x128xf32>
    %c0_7 = arith.constant 0 : index
    %c0_8 = arith.constant 0 : index
    %17 = vector.load %arg4[%c0_7, %c0_8] : memref<16x128xf32, #tpu.memory_space<vmem>>, vector<16x128xf32>
    tpu.vector_store %arg4[%c0_7, %c0_8], %16 {strides = array<i32>} : memref<16x128xf32, #tpu.memory_space<vmem>>, vector<16x128xf32>,
    return
  }
  func.func @transform_0(%arg0: i32) -> (i32, i32) {
    %c0_i32 = arith.constant 0 : i32
    %c0_i32_0 = arith.constant 0 : i32
    return %arg0, %c0_i32 : i32, i32
  }
  func.func @transform_1(%arg0: i32) -> (i32, i32) {
    %c0_i32 = arith.constant 0 : i32
    %c0_i32_0 = arith.constant 0 : i32
    %c0_i32_1 = arith.constant 0 : i32
    return %c0_i32, %c0_i32_0 : i32, i32
  }
  func.func @transform_2(%arg0: i32) -> (i32, i32) {
    %c0_i32 = arith.constant 0 : i32
    %c0_i32_0 = arith.constant 0 : i32
    %c0_i32_1 = arith.constant 0 : i32
    return %c0_i32, %c0_i32_0 : i32, i32
  }
  func.func @transform_3(%arg0: i32) -> (i32, i32) {
    %c0_i32 = arith.constant 0 : i32
    %c0_i32_0 = arith.constant 0 : i32
    return %arg0, %c0_i32 : i32, i32
  }
}

</mosaic_0001>

<llo_original>
// kernel: tpu_custom_call.1
$region0: #{tpu_custom_call.1}
  #allocation0 [shape = 'u32[]', space=smem, size = 0x4, offset = 0x4, fixed_abs, tag = 'smem constant byte address 0x4 - core index']
  #allocation1 [shape = 'u32[144,128]{1,0:T(1,128)}', space=vmem, size = 0x12000, scoped, tag = 'internal scratch']
  %s0 = inlined_call_operand.hbm [shape: bf16[16,128], index: 0, kind: input, shape index: {}]
  %s1 = inlined_call_operand.hbm [shape: bf16[128,128], index: 1, kind: input, shape index: {}]
  %s2 = inlined_call_operand.vmem [shape: f32[1,128], index: 2, kind: input, shape index: {}]
  %s3 = inlined_call_operand.hbm [shape: f32[16,128], index: 3, kind: output, shape index: {}]
  %s4 = sld [smem:[#allocation0]]
  $region30: #{tpu_custom_call.1} parent=0
    _
  %s6 = ssub.s32 1, %s4
  %s7 = scalar_select 0, %s6, %s4
  $region1: #{tpu_custom_call.1} parent=0
    #allocation2 [shape = 'u8[4096]{0}', space=vmem, size = 0x1000, scoped, tag = 'input window, operand 0, single buffered']
    #allocation3 [shape = 's32[1]{0}', space=sflag, size = 0x4, scoped, tag = 'scoped memory for tpu_custom_call.1']
    #allocation4 [shape = 's32[1]{0}', space=sflag, size = 0x4, scoped, tag = 'scoped memory for tpu_custom_call.1']
    #allocation5 [shape = 'u8[32768]{0}', space=vmem, size = 0x8000, scoped, tag = 'input window, operand 1, single buffered']
    #allocation6 [shape = 's32[1]{0}', space=sflag, size = 0x4, scoped, tag = 'scoped memory for tpu_custom_call.1']
    #allocation7 [shape = 'u8[8192]{0}', space=vmem, size = 0x2000, scoped, tag = 'output window, operand 0, single buffered']
    %8 = vsyncpa [#allocation3], 0
    %9 = vsyncpa [#allocation6], 0
    %10 = vsyncpa [#allocation4], 0
    // Predicated region
    $region2: #{tpu_custom_call.1} parent=1 // pred_check
      _
    $region3: #{tpu_custom_call.1} parent=1 // pred_check_branch
      %12 = sbr.rel (0) target = $region5
    $region4: #{tpu_custom_call.1} parent=1 // pred_region
      %s14 = ssub.s32 128, 128
      %15 = vsyncadd [#allocation3], %s14
      %s16 = sshll.u32 [#allocation2], 4
      %s17 = int_to_ptr.vmem [resolvable:$true] %s16
      %22 = dma.hbm_to_vmem [thread:$0]  %s0, 128, %s17, [#allocation3], 64, 64, 4
    $region5: #{tpu_custom_call.1} parent=1 // pred_fallthru
      _
    // Predicated region
    $region6: #{tpu_custom_call.1} parent=1 // pred_check
      _
    $region7: #{tpu_custom_call.1} parent=1 // pred_check_branch
      %24 = sbr.rel (0) target = $region9
    $region8: #{tpu_custom_call.1} parent=1 // pred_region
      %s26 = ssub.s32 1024, 1024
      %27 = vsyncadd [#allocation6], %s26
      %s28 = sshll.u32 [#allocation5], 4
      %s29 = int_to_ptr.vmem [resolvable:$true] %s28
      %34 = dma.hbm_to_vmem [thread:$0]  %s1, 1024, %s29, [#allocation6], 64, 64, 4
    $region9: #{tpu_custom_call.1} parent=1 // pred_fallthru
      _
    // Predicated region
    $region10: #{tpu_custom_call.1} parent=1 // pred_check
      _
    $region11: #{tpu_custom_call.1} parent=1 // pred_check_branch
      %36 = sbr.rel (0) target = $region13
    $region12: #{tpu_custom_call.1} parent=1 // pred_region
      _
    $region13: #{tpu_custom_call.1} parent=1 // pred_fallthru
      _
    // Predicated region
    $region14: #{tpu_custom_call.1} parent=1 // pred_check
      _
    $region15: #{tpu_custom_call.1} parent=1 // pred_check_branch
      %38 = sbr.rel (0) target = $region17
    $region16: #{tpu_custom_call.1} parent=1 // pred_region
      %39 = dma.done [#allocation3], 128
    $region17: #{tpu_custom_call.1} parent=1 // pred_fallthru
      _
    // Predicated region
    $region18: #{tpu_custom_call.1} parent=1 // pred_check
      _
    $region19: #{tpu_custom_call.1} parent=1 // pred_check_branch
      %41 = sbr.rel (0) target = $region21
    $region20: #{tpu_custom_call.1} parent=1 // pred_region
      %42 = dma.done [#allocation6], 1024
    $region21: #{tpu_custom_call.1} parent=1 // pred_fallthru
      _
    %v44 = vld [vmem:[#allocation2] sm:$0xf]
    %v45 = vld [vmem:[#allocation2 + $0x4] sm:$0xf]
    %v46 = vld [vmem:[#allocation5] sm:$0xf]
    %v47 = vld [vmem:[#allocation5 + $0x4] sm:$0xf]
    %v48 = vld [vmem:[#allocation5 + $0x8] sm:$0xf]
    %v49 = vld [vmem:[#allocation5 + $0xc] sm:$0xf]
    %v50 = vld [vmem:[#allocation5 + $0x10] sm:$0xf]
    %v51 = vld [vmem:[#allocation5 + $0x14] sm:$0xf]
    %v52 = vld [vmem:[#allocation5 + $0x18] sm:$0xf]
    %v53 = vld [vmem:[#allocation5 + $0x1c] sm:$0xf]
    %v54 = vld [vmem:[#allocation5 + $0x20] sm:$0xf]
    %v55 = vld [vmem:[#allocation5 + $0x24] sm:$0xf]
    %v56 = vld [vmem:[#allocation5 + $0x28] sm:$0xf]
    %v57 = vld [vmem:[#allocation5 + $0x2c] sm:$0xf]
    %v58 = vld [vmem:[#allocation5 + $0x30] sm:$0xf]
    %v59 = vld [vmem:[#allocation5 + $0x34] sm:$0xf]
    %v60 = vld [vmem:[#allocation5 + $0x38] sm:$0xf]
    %v61 = vld [vmem:[#allocation5 + $0x3c] sm:$0xf]
    %v62 = vld [vmem:[%s2] sm:$0x1]
    %v64 = vlaneseq
    %v65 = vshrl.u32 %v64, 7
    %v66 = vsub.s32 0, %v65
    %v67 = vrot.slane %v62, %v66
    %v71 = vunpack.c.l.b16 %v44
    %v72 = vunpack.c.l.b16 %v45
    %v73 = vpack.c.b16 %v72, %v71
    %v91 = vunpack.c.l.b16 %v46
    %v92 = vunpack.c.l.b16 %v47
    %v93 = vunpack.c.l.b16 %v48
    %v94 = vunpack.c.l.b16 %v49
    %v95 = vunpack.c.l.b16 %v50
    %v96 = vunpack.c.l.b16 %v51
    %v97 = vunpack.c.l.b16 %v52
    %v98 = vunpack.c.l.b16 %v53
    %v99 = vunpack.c.l.b16 %v54
    %v100 = vunpack.c.l.b16 %v55
    %v101 = vunpack.c.l.b16 %v56
    %v102 = vunpack.c.l.b16 %v57
    %v103 = vunpack.c.l.b16 %v58
    %v104 = vunpack.c.l.b16 %v59
    %v105 = vunpack.c.l.b16 %v60
    %v106 = vunpack.c.l.b16 %v61
    %v107 = vpack.c.b16 %v92, %v91
    %v108 = vpack.c.b16 %v94, %v93
    %v109 = vpack.c.b16 %v96, %v95
    %v110 = vpack.c.b16 %v98, %v97
    %v111 = vpack.c.b16 %v100, %v99
    %v112 = vpack.c.b16 %v102, %v101
    %v113 = vpack.c.b16 %v104, %v103
    %v114 = vpack.c.b16 %v106, %v105
    %123 = vmatprep.subr.bf16.mxu0 0
    %124 = vmatpush1.bf16.msra.mxu0 %v107
    %125 = vmatprep.subr.bf16.mxu0 0
    %126 = vmatpush1.bf16.msra.mxu0 %v108
    %127 = vmatprep.subr.bf16.mxu0 0
    %128 = vmatpush1.bf16.msra.mxu0 %v109
    %129 = vmatprep.subr.bf16.mxu0 0
    %130 = vmatpush1.bf16.msra.mxu0 %v110
    %131 = vmatprep.subr.bf16.mxu0 0
    %132 = vmatpush1.bf16.msra.mxu0 %v111
    %133 = vmatprep.subr.bf16.mxu0 0
    %134 = vmatpush1.bf16.msra.mxu0 %v112
    %135 = vmatprep.subr.bf16.mxu0 0
    %136 = vmatpush1.bf16.msra.mxu0 %v113
    %137 = vmatprep.subr.bf16.mxu0 0
    %138 = vmatpush1.bf16.msra.mxu0 %v114
    %139 = vmatprep.subr.bf16.mxu0 0
    %140 = vmatpush1.bf16.msra.mxu0 0
    %141 = vmatprep.subr.bf16.mxu0 0
    %142 = vmatpush1.bf16.msra.mxu0 0
    %143 = vmatprep.subr.bf16.mxu0 0
    %144 = vmatpush1.bf16.msra.mxu0 0
    %145 = vmatprep.subr.bf16.mxu0 0
    %146 = vmatpush1.bf16.msra.mxu0 0
    %147 = vmatprep.subr.bf16.mxu0 0
    %148 = vmatpush1.bf16.msra.mxu0 0
    %149 = vmatprep.subr.bf16.mxu0 0
    %150 = vmatpush1.bf16.msra.mxu0 0
    %151 = vmatprep.subr.bf16.mxu0 0
    %152 = vmatpush1.bf16.msra.mxu0 0
    %153 = vmatprep.subr.bf16.mxu0 0
    %154 = vmatpush1.bf16.msra.mxu0 0
    %155 = vmatprep.mubr.bf16.mxu0 0
    %156 = vmatmul.mubr.bf16.gmra.mrb[0].mxu0 %v73
    %v157 = vpop.f32.mrb[0].mxu0
    %v158 = vadd.f32 %v67, %v157
    %v159 = vpop.f32.mrb[0].mxu0
    %v160 = vpop.f32.mrb[0].mxu0
    %v161 = vadd.f32 %v67, %v160
    %v162 = vpop.f32.mrb[0].mxu0
    %163 = vdwg.mxu0
    %164 = vmax.xlane.f32.xlu0 %v158
    %v165 = vpop.xlane.xlu0 %164
    %166 = vmax.xlane.f32.xlu0 %v161
    %v167 = vpop.xlane.xlu0 %166
    %v168 = vsub.f32 %v158, %v165
    %v169 = vsub.f32 %v161, %v167
    %v170 = vmul.f32 %v168, 1.442695
    %v171 = vpow.pop %v170
    %v172 = vmul.f32 %v169, 1.442695
    %v173 = vpow.pop %v172
    %174 = vadd.xlane.f32.xlu0 %v171
    %v175 = vpop.xlane.xlu0 %174
    %176 = vadd.xlane.f32.xlu0 %v173
    %v177 = vpop.xlane.xlu0 %176
    %v178 = vlog2.pop %v175
    %v179 = vmul.f32 %v178, 0.6931472
    %v180 = vlog2.pop %v177
    %v181 = vmul.f32 %v180, 0.6931472
    %v182 = vadd.f32 %v165, %v179
    %v183 = vadd.f32 %v167, %v181
    %v184 = vsub.f32 %v158, %v182
    %v185 = vsub.f32 %v161, %v183
    %186 = vst [vmem:[#allocation7] sm:$0xff] %v184
    %187 = vst [vmem:[#allocation7 + $0x8] sm:$0xff] %v185
    // Predicated region
    $region22: #{tpu_custom_call.1} parent=1 // pred_check
      _
    $region23: #{tpu_custom_call.1} parent=1 // pred_check_branch
      %189 = sbr.rel (0) target = $region25
    $region24: #{tpu_custom_call.1} parent=1 // pred_region
      %s191 = ssub.s32 256, 256
      %192 = vsyncadd [#allocation4], %s191
      %s193 = sshll.u32 [#allocation7], 4
      %s194 = int_to_ptr.vmem [resolvable:$true] %s193
      %199 = dma.vmem_to_hbm [thread:$0]  %s194, 256, %s3, [#allocation4], 128, 128, 8
    $region25: #{tpu_custom_call.1} parent=1 // pred_fallthru
      _
    // Predicated region
    $region26: #{tpu_custom_call.1} parent=1 // pred_check
      _
    $region27: #{tpu_custom_call.1} parent=1 // pred_check_branch
      %201 = sbr.rel (0) target = $region29
    $region28: #{tpu_custom_call.1} parent=1 // pred_region
      %202 = dma.done [#allocation4], 256
    $region29: #{tpu_custom_call.1} parent=1 // pred_fallthru
      _
    %203 = vsyncpa [#allocation3], 1
    %204 = vsyncpa [#allocation6], 1
    %205 = vsyncpa [#allocation4], 1

</llo_original>
